<compile_context>
chip_gen: v7x
topology: tpu7x:2x2x1
jax: 0.10.0
libtpu: 0.0.40
codegen_flags: <defaults>
</compile_context>

<pallas_src>
import functools

import jax
import jax.numpy as jnp
from jax.experimental import pallas as pl
from jax.experimental.pallas import tpu as pltpu

_LANES = 128
_ACC_ROWS = 8  # accumulator = exactly one f32 vreg (8 x 128)


def _round_up(x, m):
    return ((x + m - 1) // m) * m


def _sublane_multiple(dtype):
    # f32 -> 8, bf16/f16 -> 16, int8/fp8 -> 32
    return max(8, 32 // jnp.dtype(dtype).itemsize)


def _elementwise_loss(p, t, loss_type):
    d = p.astype(jnp.float32) - t.astype(jnp.float32)
    if loss_type == "mse":
        return d * d
    elif loss_type == "l1":
        return jnp.abs(d)
    elif loss_type == "smooth_l1":
        ad = jnp.abs(d)
        # PyTorch smooth_l1_loss default beta = 1.0
        return jnp.where(ad < 1.0, 0.5 * d * d, ad - 0.5)
    raise ValueError(f"Unsupported loss type: {loss_type}")


def _chip_config():
    """(per-input block bytes, max megacore splits, vmem limit bytes)."""
    try:
        kind = jax.devices()[0].device_kind.lower()
    except Exception:
        kind = ""
    is_v7x = ("v7" in kind) or ("7x" in kind)
    if is_v7x:
        return (4 << 20), 2, (48 << 20)   # 2 TCs, fast HBM -> big blocks
    return (2 << 20), 1, (32 << 20)       # v6e / v5e: 1 TC, modest blocks


def _soc_loss_kernel(p_ref, t_ref, o_ref, acc_ref, *,
                     loss_type, rows, block_rows, steps, nblocks, need_mask):
    j = pl.program_id(1)

    @pl.when(j == 0)
    def _():
        acc_ref[...] = jnp.zeros_like(acc_ref)

    val = _elementwise_loss(p_ref[...], t_ref[...], loss_type)

    def fold(v):
        # (block_rows, 128) -> (block_rows//8, 8, 128) summed over the leading
        # axis: pure VPU vreg adds ending in a single (8, 128) accumulator.
        return v.reshape(-1, _ACC_ROWS, _LANES).sum(axis=0)

    if need_mask:
        i = pl.program_id(0)
        blk = i * steps + j            # un-clamped block index (DMA is clamped)
        is_tail = blk >= (nblocks - 1)

        @pl.when(jnp.logical_not(is_tail))
        def _():
            # Hot path: fully in-bounds block, no mask work at all.
            acc_ref[...] += fold(val)

        @pl.when(is_tail)
        def _():
            # Boundary / duplicated block: rows past the array may hold garbage
            # (possibly inf/NaN).  The select discards them; never replace this
            # with a multiply-by-mask (NaN * 0 = NaN would leak).
            row_ids = blk * block_rows + jax.lax.broadcasted_iota(
                jnp.int32, val.shape, 0)
            acc_ref[...] += fold(jnp.where(row_ids < rows, val, 0.0))
    else:
        acc_ref[...] += fold(val)

    @pl.when(j == steps - 1)
    def _():
        total = jnp.sum(acc_ref[...])
        o_ref[...] = jnp.broadcast_to(total, o_ref.shape)


def soc_regression_loss(predictions, targets, loss_type="mse"):
    """Pallas equivalent of SOCRegressionLoss.forward (mean reduction)."""
    assert predictions.shape == targets.shape, "shape mismatch"
    n = predictions.size
    assert n > 0, "empty input"

    p_flat = predictions.reshape(-1)
    t_flat = targets.reshape(-1)

    # Ragged (<128-element) tail handled with plain jnp instead of jnp.pad.
    n_main = (n // _LANES) * _LANES
    if n_main != n:
        tail_sum = jnp.sum(
            _elementwise_loss(p_flat[n_main:], t_flat[n_main:], loss_type))
    else:
        tail_sum = jnp.float32(0.0)

    if n_main == 0:
        # Fewer than 128 elements total: pure jnp path.
        return (tail_sum * jnp.float32(1.0 / n)).astype(jnp.float32)

    rows = n_main // _LANES
    p2 = p_flat[:n_main].reshape(rows, _LANES)
    t2 = t_flat[:n_main].reshape(rows, _LANES)

    per_input_bytes, max_splits, vmem_limit = _chip_config()

    itemsize_p = jnp.dtype(p2.dtype).itemsize
    itemsize_t = jnp.dtype(t2.dtype).itemsize
    sub = max(_sublane_multiple(p2.dtype), _sublane_multiple(t2.dtype))

    # Rows budgeted by HBM bytes per step (both inputs) and by the f32
    # working-set (bounds any spilled elementwise temporaries).
    hbm_rows = (2 * per_input_bytes) // (_LANES * (itemsize_p + itemsize_t))
    work_rows = per_input_bytes // (_LANES * 4)
    cap_rows = max(sub, (min(hbm_rows, work_rows) // sub) * sub)
    block_rows = min(cap_rows, _round_up(rows, sub))

    nblocks = pl.cdiv(rows, block_rows)
    num_splits = min(max_splits, nblocks)
    steps = pl.cdiv(nblocks, num_splits)
    need_mask = (num_splits * steps * block_rows) != rows

    def in_index(i, j):
        # Clamp so duplicated tail iterations never address past the array;
        # their contribution is zeroed in-kernel (mask uses the un-clamped
        # index, so duplicated blocks stay fully masked).
        blk = jnp.minimum(i * steps + j, nblocks - 1)
        return (blk, 0)

    kernel = functools.partial(
        _soc_loss_kernel,
        loss_type=loss_type, rows=rows, block_rows=block_rows,
        steps=steps, nblocks=nblocks, need_mask=need_mask,
    )

    cost = pl.CostEstimate(
        flops=3 * n_main,
        transcendentals=0,
        bytes_accessed=n_main * (itemsize_p + itemsize_t)
        + num_splits * _LANES * 4,
    )

    # NOTE: pipeline_mode=pl.Buffered(3) on the input specs is a possible
    # small extra win on v7x; double buffering is kept here for portability.
    partials = pl.pallas_call(
        kernel,
        out_shape=jax.ShapeDtypeStruct((num_splits, 1, _LANES), jnp.float32),
        grid_spec=pltpu.PrefetchScalarGridSpec(
            num_scalar_prefetch=0,
            grid=(num_splits, steps),
            in_specs=[
                pl.BlockSpec((block_rows, _LANES), in_index),
                pl.BlockSpec((block_rows, _LANES), in_index),
            ],
            out_specs=pl.BlockSpec((1, 1, _LANES), lambda i, j: (i, 0, 0)),
            scratch_shapes=[pltpu.VMEM((_ACC_ROWS, _LANES), jnp.float32)],
        ),
        compiler_params=pltpu.CompilerParams(
            dimension_semantics=("parallel", "arbitrary"),
            vmem_limit_bytes=vmem_limit,
        ),
        cost_estimate=cost,
    )(p2, t2)

    main_sum = jnp.sum(partials[:, 0, 0])
    return ((main_sum + tail_sum) * jnp.float32(1.0 / n)).astype(jnp.float32)


if __name__ == "__main__":
    key = jax.random.PRNGKey(0)
    kp, kt = jax.random.split(key)

    # Small SOC regression batch: (batch=2, channels=4, H=16, W=16)
    preds = jax.random.uniform(kp, (2, 4, 16, 16), dtype=jnp.float32)
    targs = jax.random.uniform(kt, (2, 4, 16, 16), dtype=jnp.float32)

    ok = True
    for loss_type in ("mse", "l1", "smooth_l1"):
        loss = soc_regression_loss(preds, targs, loss_type=loss_type)
        loss = jax.block_until_ready(loss)

        d = preds.astype(jnp.float32) - targs.astype(jnp.float32)
        if loss_type == "mse":
            ref = jnp.mean(d * d)
        elif loss_type == "l1":
            ref = jnp.mean(jnp.abs(d))
        else:
            ad = jnp.abs(d)
            ref = jnp.mean(jnp.where(ad < 1.0, 0.5 * d * d, ad - 0.5))

        if not jnp.allclose(loss, ref, rtol=1e-5, atol=1e-6):
            ok = False

    if ok:
        print("KERNEL_OK")
</pallas_src>

<mosaic_0001>
module attributes {stable_mosaic.version = 11 : i64} {
  func.func @_soc_loss_kernel(%arg0: i32, %arg1: i32, %arg2: memref<16x128xf32, #tpu.memory_space<vmem>>, %arg3: memref<16x128xf32, #tpu.memory_space<vmem>>, %arg4: memref<1x1x128xf32, #tpu.memory_space<vmem>>, %arg5: memref<8x128xf32, #tpu.memory_space<vmem>>) attributes {dimension_semantics = [#tpu.dimension_semantics<parallel>, #tpu.dimension_semantics<arbitrary>], iteration_bounds = array<i64: 1, 1>, scalar_prefetch = 0 : i64, scratch_operands = 1 : i64, tpu.core_type = #tpu.core_type<tc>, window_params = [{transform_indices = @transform_0, window_bounds = array<i64: 16, 128>}, {transform_indices = @transform_1, window_bounds = array<i64: 16, 128>}, {transform_indices = @transform_2, window_bounds = array<i64: 1, 1, 128>}]} {
    %c0_i32 = arith.constant 0 : i32
    %0 = arith.cmpi eq, %arg1, %c0_i32 : i32
    %1 = arith.extui %0 : i1 to i32
    %c0_i32_0 = arith.constant 0 : i32
    %2 = arith.cmpi ne, %1, %c0_i32_0 : i32
    scf.if %2 {
      %cst_10 = arith.constant 0.000000e+00 : f32
      %15 = vector.broadcast %cst_10 : f32 to vector<8x128xf32>
      %c0_11 = arith.constant 0 : index
      %c0_12 = arith.constant 0 : index
      %16 = vector.load %arg5[%c0_11, %c0_12] : memref<8x128xf32, #tpu.memory_space<vmem>>, vector<8x128xf32>
      tpu.vector_store %arg5[%c0_11, %c0_12], %15 {strides = array<i32>} : memref<8x128xf32, #tpu.memory_space<vmem>>, vector<8x128xf32>,
    } else {
    }
    %c0 = arith.constant 0 : index
    %c0_1 = arith.constant 0 : index
    %3 = vector.load %arg2[%c0, %c0_1] : memref<16x128xf32, #tpu.memory_space<vmem>>, vector<16x128xf32>
    %c0_2 = arith.constant 0 : index
    %c0_3 = arith.constant 0 : index
    %4 = vector.load %arg3[%c0_2, %c0_3] : memref<16x128xf32, #tpu.memory_space<vmem>>, vector<16x128xf32>
    %5 = arith.subf %3, %4 : vector<16x128xf32>
    %6 = arith.mulf %5, %5 : vector<16x128xf32>
    %c0_4 = arith.constant 0 : index
    %c0_5 = arith.constant 0 : index
    %7 = vector.load %arg5[%c0_4, %c0_5] : memref<8x128xf32, #tpu.memory_space<vmem>>, vector<8x128xf32>
    %8 = vector.shape_cast %6 : vector<16x128xf32> to vector<2x8x128xf32>
    %cst = arith.constant dense<0.000000e+00> : vector<8x128xf32>
    %9 = vector.multi_reduction <add>, %8, %cst [0] : vector<2x8x128xf32> to vector<8x128xf32>
    %10 = arith.addf %7, %9 : vector<8x128xf32>
    %c0_6 = arith.constant 0 : index
    %c0_7 = arith.constant 0 : index
    %11 = vector.load %arg5[%c0_6, %c0_7] : memref<8x128xf32, #tpu.memory_space<vmem>>, vector<8x128xf32>
    tpu.vector_store %arg5[%c0_6, %c0_7], %10 {strides = array<i32>} : memref<8x128xf32, #tpu.memory_space<vmem>>, vector<8x128xf32>,
    %c0_i32_8 = arith.constant 0 : i32
    %12 = arith.cmpi eq, %arg1, %c0_i32_8 : i32
    %13 = arith.extui %12 : i1 to i32
    %c0_i32_9 = arith.constant 0 : i32
    %14 = arith.cmpi ne, %13, %c0_i32_9 : i32
    scf.if %14 {
      %c0_10 = arith.constant 0 : index
      %c0_11 = arith.constant 0 : index
      %15 = vector.load %arg5[%c0_10, %c0_11] : memref<8x128xf32, #tpu.memory_space<vmem>>, vector<8x128xf32>
      %16 = vector.shape_cast %15 : vector<8x128xf32> to vector<1x8x128xf32>
      %cst_12 = arith.constant dense<0.000000e+00> : vector<1xf32>
      %17 = vector.multi_reduction <add>, %16, %cst_12 [1, 2] : vector<1x8x128xf32> to vector<1xf32>
      %18 = vector.shape_cast %17 : vector<1xf32> to vector<1x1x1xf32>
      %19 = vector.extract %18[0, 0, 0] : f32 from vector<1x1x1xf32>
      %20 = vector.broadcast %19 : f32 to vector<1x1x128xf32>
      %c0_13 = arith.constant 0 : index
      %c0_14 = arith.constant 0 : index
      %c0_15 = arith.constant 0 : index
      %21 = vector.load %arg4[%c0_13, %c0_14, %c0_15] : memref<1x1x128xf32, #tpu.memory_space<vmem>>, vector<1x1x128xf32>
      tpu.vector_store %arg4[%c0_13, %c0_14, %c0_15], %20 {strides = array<i32>} : memref<1x1x128xf32, #tpu.memory_space<vmem>>, vector<1x1x128xf32>,
    } else {
    }
    return
  }
  func.func @transform_0(%arg0: i32, %arg1: i32) -> (i32, i32) {
    %c1_i32 = arith.constant 1 : i32
    %0 = arith.muli %arg0, %c1_i32 : i32
    %1 = arith.addi %0, %arg1 : i32
    %c0_i32 = arith.constant 0 : i32
    %2 = arith.minsi %1, %c0_i32 : i32
    %c0_i32_0 = arith.constant 0 : i32
    %c0_i32_1 = arith.constant 0 : i32
    return %2, %c0_i32_0 : i32, i32
  }
  func.func @transform_1(%arg0: i32, %arg1: i32) -> (i32, i32) {
    %c1_i32 = arith.constant 1 : i32
    %0 = arith.muli %arg0, %c1_i32 : i32
    %1 = arith.addi %0, %arg1 : i32
    %c0_i32 = arith.constant 0 : i32
    %2 = arith.minsi %1, %c0_i32 : i32
    %c0_i32_0 = arith.constant 0 : i32
    %c0_i32_1 = arith.constant 0 : i32
    return %2, %c0_i32_0 : i32, i32
  }
  func.func @transform_2(%arg0: i32, %arg1: i32) -> (i32, i32, i32) {
    %c0_i32 = arith.constant 0 : i32
    %c0_i32_0 = arith.constant 0 : i32
    %c0_i32_1 = arith.constant 0 : i32
    return %arg0, %c0_i32, %c0_i32_0 : i32, i32, i32
  }
}

</mosaic_0001>

<llo_original>
// kernel: tpu_custom_call.1
$region0: #{tpu_custom_call.1}
  #allocation0 [shape = 'u32[]', space=smem, size = 0x4, offset = 0x4, fixed_abs, tag = 'smem constant byte address 0x4 - core index']
  #allocation1 [shape = 'u32[144,128]{1,0:T(1,128)}', space=vmem, size = 0x12000, scoped, tag = 'internal scratch']
  #allocation2 [shape = 'f32[8,128]{1,0:T(8,128)}', space=vmem, size = 0x1000, scoped, tag = 'scratch operand']
  %s0 = inlined_call_operand.hbm [shape: f32[16,128], index: 0, kind: input, shape index: {}]
  %s1 = inlined_call_operand.hbm [shape: f32[16,128], index: 1, kind: input, shape index: {}]
  %s2 = inlined_call_operand.hbm [shape: f32[1,1,128], index: 2, kind: output, shape index: {}]
  %s3 = sld [smem:[#allocation0]]
  $region34: #{tpu_custom_call.1} parent=0
    _
  %s5 = ssub.s32 1, %s3
  %s6 = scalar_select 0, %s5, %s3
  $region1: #{tpu_custom_call.1} parent=0
    #allocation3 [shape = 'u8[8192]{0}', space=vmem, size = 0x2000, scoped, tag = 'input window, operand 0, single buffered']
    #allocation4 [shape = 's32[1]{0}', space=sflag, size = 0x4, scoped, tag = 'scoped memory for tpu_custom_call.1']
    #allocation5 [shape = 's32[1]{0}', space=sflag, size = 0x4, scoped, tag = 'scoped memory for tpu_custom_call.1']
    #allocation6 [shape = 'u8[8192]{0}', space=vmem, size = 0x2000, scoped, tag = 'input window, operand 1, single buffered']
    #allocation7 [shape = 's32[1]{0}', space=sflag, size = 0x4, scoped, tag = 'scoped memory for tpu_custom_call.1']
    #allocation8 [shape = 'u8[512]{0}', space=vmem, size = 0x400, scoped, tag = 'output window, operand 0, single buffered']
    %7 = vsyncpa [#allocation4], 0
    %8 = vsyncpa [#allocation7], 0
    %9 = vsyncpa [#allocation5], 0
    // Predicated region
    $region2: #{tpu_custom_call.1} parent=1 // pred_check
      _
    $region3: #{tpu_custom_call.1} parent=1 // pred_check_branch
      %11 = sbr.rel (0) target = $region5
    $region4: #{tpu_custom_call.1} parent=1 // pred_region
      %s12 = sadd.s32 0, 0
      %p13 = scmp.lt.s32.totalorder %s12, 0
      %s14 = scalar_select %p13, %s12, 0
      %s15 = smul.u32 2, %s14
      %s17 = ssub.s32 256, 256
      %18 = vsyncadd [#allocation4], %s17
      %s19 = smul.addr %s15, 128
      %s20 = scalar_lea.hbm %s0, %s19
      %s21 = sshll.u32 [#allocation3], 4
      %s22 = int_to_ptr.vmem [resolvable:$true] %s21
      %27 = dma.hbm_to_vmem [thread:$0]  %s20, 256, %s22, [#allocation4], 128, 128, 8
    $region5: #{tpu_custom_call.1} parent=1 // pred_fallthru
      _
    // Predicated region
    $region6: #{tpu_custom_call.1} parent=1 // pred_check
      _
    $region7: #{tpu_custom_call.1} parent=1 // pred_check_branch
      %29 = sbr.rel (0) target = $region9
    $region8: #{tpu_custom_call.1} parent=1 // pred_region
      %s30 = sadd.s32 0, 0
      %p31 = scmp.lt.s32.totalorder %s30, 0
      %s32 = scalar_select %p31, %s30, 0
      %s33 = smul.u32 2, %s32
      %s35 = ssub.s32 256, 256
      %36 = vsyncadd [#allocation7], %s35
      %s37 = smul.addr %s33, 128
      %s38 = scalar_lea.hbm %s1, %s37
      %s39 = sshll.u32 [#allocation6], 4
      %s40 = int_to_ptr.vmem [resolvable:$true] %s39
      %45 = dma.hbm_to_vmem [thread:$0]  %s38, 256, %s40, [#allocation7], 128, 128, 8
    $region9: #{tpu_custom_call.1} parent=1 // pred_fallthru
      _
    // Predicated region
    $region10: #{tpu_custom_call.1} parent=1 // pred_check
      _
    $region11: #{tpu_custom_call.1} parent=1 // pred_check_branch
      %47 = sbr.rel (0) target = $region13
    $region12: #{tpu_custom_call.1} parent=1 // pred_region
      %48 = dma.done [#allocation4], 256
    $region13: #{tpu_custom_call.1} parent=1 // pred_fallthru
      _
    // Predicated region
    $region14: #{tpu_custom_call.1} parent=1 // pred_check
      _
    $region15: #{tpu_custom_call.1} parent=1 // pred_check_branch
      %50 = sbr.rel (0) target = $region17
    $region16: #{tpu_custom_call.1} parent=1 // pred_region
      %51 = dma.done [#allocation7], 256
    $region17: #{tpu_custom_call.1} parent=1 // pred_fallthru
      _
    %s52 = sadd.s32 0, 0
    %p53 = scmp.lt.s32.totalorder %s52, 0
    %s54 = scalar_select %p53, %s52, 0
    %s55 = smul.u32 2, %s54
    %s56 = sadd.s32 0, 0
    %p57 = scmp.lt.s32.totalorder %s56, 0
    %s58 = scalar_select %p57, %s56, 0
    %s59 = smul.u32 2, %s58
    %p60 = scmp.eq.s32.totalorder 0, 0
    // Predicated region
    $region18: #{tpu_custom_call.1} parent=1 // pred_check
      %p61 = pneg %p60
    $region19: #{tpu_custom_call.1} parent=1 // pred_check_branch
      %63 = sbr.rel (%p61) target = $region21
    $region20: #{tpu_custom_call.1} parent=1 // pred_region
      %64 = vst [vmem:[#allocation2] sm:$0xff] 0.0
    $region21: #{tpu_custom_call.1} parent=1 // pred_fallthru
      _
    %v65 = vld [vmem:[#allocation3] sm:$0xff]
    %v66 = vld [vmem:[#allocation3 + $0x8] sm:$0xff]
    %v67 = vld [vmem:[#allocation6] sm:$0xff]
    %v68 = vld [vmem:[#allocation6 + $0x8] sm:$0xff]
    %v69 = vsub.f32 %v65, %v67
    %v70 = vsub.f32 %v66, %v68
    %v71 = vmul.f32 %v69, %v69
    %v72 = vmul.f32 %v70, %v70
    %v73 = vld [vmem:[#allocation2] sm:$0xff]
    %v74 = vadd.f32 %v71, %v72
    %v75 = vadd.f32 %v73, %v74
    %76 = vst [vmem:[#allocation2] sm:$0xff] %v75
    // Predicated region
    $region22: #{tpu_custom_call.1} parent=1 // pred_check
      %p77 = pneg %p60
    $region23: #{tpu_custom_call.1} parent=1 // pred_check_branch
      %79 = sbr.rel (%p77) target = $region25
    $region24: #{tpu_custom_call.1} parent=1 // pred_region
      %v80 = vld [vmem:[#allocation2] sm:$0xff]
      %81 = vadd.xlane.f32.xlu0 %v80
      %v82 = vpop.xlane.xlu0 %81
      %v83 = vrot.slane %v82, 4
      %v84 = vadd.f32 %v82, %v83
      %v85 = vrot.slane %v84, 2
      %v86 = vadd.f32 %v84, %v85
      %v87 = vrot.slane %v86, 1
      %v88 = vadd.f32 %v86, %v87
      %s89 = vtos %v88
      %v90 = vstv %s89
      %91 = vst [vmem:[#allocation8] sm:$0x1] %v90
    $region25: #{tpu_custom_call.1} parent=1 // pred_fallthru
      _
    // Predicated region
    $region26: #{tpu_custom_call.1} parent=1 // pred_check
      _
    $region27: #{tpu_custom_call.1} parent=1 // pred_check_branch
      %93 = sbr.rel (0) target = $region29
    $region28: #{tpu_custom_call.1} parent=1 // pred_region
      %s95 = ssub.s32 16, 16
      %96 = vsyncadd [#allocation5], %s95
      %s98 = sshll.u32 [#allocation8], 4
      %s99 = int_to_ptr.vmem [resolvable:$true] %s98
      %101 = dma.vmem_to_hbm [thread:$0]  %s99, 16, %s2, [#allocation5]
    $region29: #{tpu_custom_call.1} parent=1 // pred_fallthru
      _
    // Predicated region
    $region30: #{tpu_custom_call.1} parent=1 // pred_check
      _
    $region31: #{tpu_custom_call.1} parent=1 // pred_check_branch
      %103 = sbr.rel (0) target = $region33
    $region32: #{tpu_custom_call.1} parent=1 // pred_region
      %104 = dma.done [#allocation5], 16
    $region33: #{tpu_custom_call.1} parent=1 // pred_fallthru
      _
    %105 = vsyncpa [#allocation4], 1
    %106 = vsyncpa [#allocation7], 1
    %107 = vsyncpa [#allocation5], 1

</llo_original>
